<compile_context>
chip_gen: v6e
topology: v6e:2x2x1
jax: 0.10.0
libtpu: 0.0.40
codegen_flags: <defaults>
</compile_context>

<pallas_src>
import functools

import jax
import jax.numpy as jnp
import numpy as np
from jax import lax
from jax.experimental import pallas as pl
from jax.experimental.pallas import tpu as pltpu

_TM = 128   # voxel (output) slots per tile  -> lanes of the output block
_TN = 256   # points per block (reduction)   -> lanes of the feature block


def _round_up(x, m):
    return (x + m - 1) // m * m


# ----------------------------------------------------------------------------
# Pallas kernels
# ----------------------------------------------------------------------------
def _scatter_sum_mean_kernel(tile_ref, blk_ref, flg_ref, p2v_ref, feats_ref,
                             out_ref, acc_ref, *, tm, c, steps, do_mean):
    del blk_ref                        # only used by the index_maps
    p = pl.program_id(0)               # tile parity (parallel over TensorCores)
    s = pl.program_id(1)               # flattened active (tile, block) step
    idx = p * steps + s
    flags = flg_ref[idx]
    first = (flags & 1) != 0           # first point block of this voxel tile
    last = (flags & 2) != 0            # last point block of this voxel tile
    active = (flags & 4) != 0          # schedule padding steps do nothing
    tile = tile_ref[idx]

    @pl.when(active)
    def _accumulate():
        p2v = p2v_ref[...]                                             # (1, tn)
        slot = tile * tm + lax.broadcasted_iota(jnp.int32, (tm, 1), 0)
        onehot = (slot == p2v).astype(jnp.bfloat16)                    # (tm, tn)
        # (c+1, tn) x (tm, tn) contracted on the point axis -> (c+1, tm); bf16
        # operands (one-hot is exact in bf16), f32 accumulation on the MXU.
        # The last feature row is all ones => last acc row = per-voxel count.
        contrib = lax.dot_general(feats_ref[...], onehot,
                                  (((1,), (1,)), ((), ())),
                                  preferred_element_type=jnp.float32)

        @pl.when(first)
        def _():
            acc_ref[...] = contrib

        @pl.when(jnp.logical_not(first))
        def _():
            acc_ref[...] += contrib

    @pl.when(last)
    def _finalize():
        acc = acc_ref[...]
        vals = acc[:c, :]
        if do_mean:
            vals = vals / jnp.maximum(acc[c:c + 1, :], 1.0)
        out_ref[...] = vals.astype(out_ref.dtype)


def _scatter_max_kernel(tile_ref, blk_ref, flg_ref, p2v_ref, feats_ref,
                        out_ref, acc_ref, *, tm, tn, c, steps):
    del blk_ref
    p = pl.program_id(0)
    s = pl.program_id(1)
    idx = p * steps + s
    flags = flg_ref[idx]
    first = (flags & 1) != 0
    last = (flags & 2) != 0
    active = (flags & 4) != 0
    tile = tile_ref[idx]

    @pl.when(active)
    def _accumulate():
        p2v = p2v_ref[...]                               # (1, tn) int32
        vals = feats_ref[...].astype(jnp.float32)        # (c+1, tn)

        # Segmented (sorted-run) suffix-max scan along the point axis.  Points
        # are sorted by voxel slot, so each slot's points form one contiguous
        # run in the block; the circular wrap of the roll can only ever match
        # within the same run, so it is harmless.  After the scan, the first
        # lane of each run holds the block-local run max.
        sh = 1
        while sh < tn:
            ks = pltpu.roll(p2v, shift=tn - sh, axis=1)
            vs = pltpu.roll(vals, shift=tn - sh, axis=1)
            vals = jnp.where(p2v == ks, jnp.maximum(vals, vs), vals)
            sh *= 2

        lane = lax.broadcasted_iota(jnp.int32, (1, tn), 1)
        diff = p2v != pltpu.roll(p2v, shift=1, axis=1)                 # (1, tn)
        single_run = jnp.logical_not(jnp.any(diff, axis=1, keepdims=True))
        rep = diff | (single_run & (lane == 0))          # one lane per run

        slot = tile * tm + lax.broadcasted_iota(jnp.int32, (tm, 1), 0)
        onehot = ((slot == p2v) & rep).astype(jnp.bfloat16)            # (tm, tn)
        # Selection matmul: bf16 x bf16 -> f32 picks each voxel's run max; the
        # appended ones row yields the hit flag (1.0 iff the voxel has points
        # in this block).  Selected values are exact (bf16 * 1, f32 acc).
        res = lax.dot_general(vals.astype(jnp.bfloat16), onehot,
                              (((1,), (1,)), ((), ())),
                              preferred_element_type=jnp.float32)      # (c+1, tm)
        hit = res[c:c + 1, :] > 0.5
        cur = jnp.where(hit, res, -jnp.inf)

        @pl.when(first)
        def _():
            acc_ref[...] = cur

        @pl.when(jnp.logical_not(first))
        def _():
            acc_ref[...] = jnp.maximum(acc_ref[...], cur)

    @pl.when(last)
    def _finalize():
        vals = acc_ref[...][:c, :]
        # empty voxel slots / padding -> 0 (matches mmcv / reference behaviour)
        out_ref[...] = jnp.where(vals > -jnp.inf, vals,
                                 0.0).astype(out_ref.dtype)


def _scatter_reduce_pallas(step_tile, step_blk, step_flags, p2v_row, feats_t,
                           m_pad, reduce_type, tm, tn):
    """step_*: (2*steps,) int32 flattened per-parity schedules.
       p2v_row : (1, n_pad) int32 voxel slot per sorted point (>= m_pad: drop).
       feats_t : (c+1, n_pad) bf16 transposed features with appended ones row.
       Returns (c, m_pad) f32 (transposed voxel features)."""
    c1, n_pad = feats_t.shape
    c = c1 - 1
    assert m_pad % tm == 0 and n_pad % tn == 0
    assert tm % 128 == 0 and tn % 128 == 0
    gm = m_pad // tm
    assert gm % 2 == 0
    steps = step_tile.shape[0] // 2

    def blk_map(p, s, tile_ref, blk_ref, flg_ref):
        # Outside a tile's active range the block index repeats, so Pallas
        # elides the DMA and the kernel body is skipped via the active flag.
        return (0, blk_ref[p * steps + s])

    def out_map(p, s, tile_ref, blk_ref, flg_ref):
        return (0, tile_ref[p * steps + s])

    if reduce_type == "max":
        kernel = functools.partial(_scatter_max_kernel, tm=tm, tn=tn, c=c,
                                   steps=steps)
    elif reduce_type in ("sum", "mean"):
        kernel = functools.partial(_scatter_sum_mean_kernel, tm=tm, c=c,
                                   steps=steps, do_mean=(reduce_type == "mean"))
    else:
        raise ValueError(f"unsupported reduce_type {reduce_type!r}")

    return pl.pallas_call(
        kernel,
        out_shape=jax.ShapeDtypeStruct((c, m_pad), jnp.float32),
        grid_spec=pltpu.PrefetchScalarGridSpec(
            num_scalar_prefetch=3,
            grid=(2, steps),
            in_specs=[
                pl.BlockSpec((1, tn), blk_map),     # point -> voxel slot map
                pl.BlockSpec((c1, tn), blk_map),    # transposed point features
            ],
            out_specs=pl.BlockSpec((c, tm), out_map),
            scratch_shapes=[pltpu.VMEM((c1, tm), jnp.float32)],
        ),
        compiler_params=pltpu.CompilerParams(
            dimension_semantics=("parallel", "arbitrary")),
    )(step_tile, step_blk, step_flags, p2v_row, feats_t)


# ----------------------------------------------------------------------------
# dynamic_point_to_voxel_forward equivalent (index glue in plain JAX)
# ----------------------------------------------------------------------------
@functools.partial(jax.jit, static_argnames=("reduce_type", "tm", "tn"))
def dynamic_scatter(feats, coors, reduce_type="max", tm=_TM, tn=_TN):
    """Returns (voxel_feats (M_pad, C), voxel_coors (M_pad, ndim), num_voxels,
    point2voxel_map (N,)).  Only the first num_voxels rows are valid; voxels
    are ordered by ascending (batch, z, y, x).  Points with any negative
    coordinate are dropped (map value -1)."""
    feats = jnp.asarray(feats, jnp.float32)
    coors = jnp.asarray(coors, jnp.int32)
    n, c = feats.shape
    ndim = coors.shape[1]

    n_pad = _round_up(max(n, tn), tn)
    m_pad = _round_up(max(n, 2 * tm), 2 * tm)   # even tile count -> 2 parities
    gm, gn = m_pad // tm, n_pad // tn

    valid = jnp.all(coors >= 0, axis=1)

    # One variadic lexicographic sort (column 0 = batch most significant),
    # invalid points last.  The sorted key columns double as sorted coords.
    # NOTE: legitimate coordinates are assumed < INT32_MAX (the sentinel).
    big = jnp.int32(jnp.iinfo(jnp.int32).max)
    keys = tuple(jnp.where(valid, coors[:, d], big) for d in range(ndim))
    sorted_ops = lax.sort(keys + (jnp.arange(n, dtype=jnp.int32),),
                          num_keys=ndim, is_stable=False)
    order = sorted_ops[-1]
    coors_s = jnp.stack(sorted_ops[:ndim], axis=1)
    valid_s = valid[order]

    # Dense voxel slot ids in sorted order (no linearized key -> no overflow).
    changed = jnp.concatenate(
        [jnp.ones((1,), bool), jnp.any(coors_s[1:] != coors_s[:-1], axis=1)])
    is_new = valid_s & changed
    slot = jnp.cumsum(is_new.astype(jnp.int32)) - 1
    num_voxels = jnp.sum(is_new).astype(jnp.int32)
    p2v_sorted = jnp.where(valid_s, slot, m_pad).astype(jnp.int32)   # sentinel

    p2v_pad = jnp.full((n_pad,), m_pad, jnp.int32).at[:n].set(p2v_sorted)

    # Transposed bf16 features with appended ones row, written directly into
    # the padded (C+1, n_pad) lane-dense layout (no pad->concat->T chain).
    feats_t = jnp.zeros((c + 1, n_pad), jnp.bfloat16)
    feats_t = feats_t.at[:c, :n].set(feats[order].astype(jnp.bfloat16).T)
    feats_t = feats_t.at[c, :n].set(valid_s.astype(jnp.bfloat16))

    # Per-voxel-tile contiguous range of point blocks.
    tile_lo = jnp.arange(gm, dtype=jnp.int32) * tm
    lo = jnp.searchsorted(p2v_pad, tile_lo, side="left")
    hi = jnp.searchsorted(p2v_pad, tile_lo + tm, side="left")
    start_blk = jnp.minimum(lo // tn, gn - 1).astype(jnp.int32)
    end_blk = jnp.maximum(jnp.clip((hi - 1) // tn, 0, gn - 1),
                          start_blk).astype(jnp.int32)
    n_blk = end_blk - start_blk + 1                                  # (gm,)

    # Flattened schedule over only the active (tile, block) pairs, one per
    # tile parity.  Static per-parity bound: one step per (possibly empty)
    # tile plus, per point block, the <= (tn-1)//tm + 2 tiles it can span
    # (slots increase by at most 1 between consecutive sorted points).
    steps = gm // 2 + gn * ((tn - 1) // tm + 2)

    def parity_tables(par):
        tiles = jnp.arange(par, gm, 2, dtype=jnp.int32)              # (gm//2,)
        npt = n_blk[tiles]
        off = jnp.cumsum(npt) - npt                                  # exclusive
        total = off[-1] + npt[-1]
        s_idx = jnp.arange(steps, dtype=jnp.int32)
        pos = jnp.clip(jnp.searchsorted(off, s_idx, side="right") - 1,
                       0, tiles.shape[0] - 1)
        tile = tiles[pos]
        within = s_idx - off[pos]
        blk = jnp.minimum(start_blk[tile] + within, end_blk[tile])
        activ = s_idx < total
        first = (within == 0) & activ
        lastf = (within == npt[pos] - 1) & activ
        flags = (first.astype(jnp.int32) + 2 * lastf.astype(jnp.int32)
                 + 4 * activ.astype(jnp.int32))
        return tile, blk, flags

    t0, b0, f0 = parity_tables(0)
    t1, b1, f1 = parity_tables(1)
    step_tile = jnp.concatenate([t0, t1]).astype(jnp.int32)          # (2*steps,)
    step_blk = jnp.concatenate([b0, b1]).astype(jnp.int32)
    step_flags = jnp.concatenate([f0, f1]).astype(jnp.int32)

    voxel_feats = _scatter_reduce_pallas(
        step_tile, step_blk, step_flags, p2v_pad.reshape(1, n_pad), feats_t,
        m_pad, reduce_type, tm, tn).T                                # (m_pad, c)

    # Representative coordinates per voxel slot (all points of a slot agree).
    voxel_coors = jnp.zeros((m_pad, ndim), jnp.int32).at[
        jnp.where(valid_s, slot, m_pad)].set(coors_s, mode="drop")

    # point -> voxel map back in the original point order (-1 = dropped).
    p2v = jnp.zeros((n,), jnp.int32).at[order].set(
        jnp.where(valid_s, slot, -1).astype(jnp.int32))

    return voxel_feats, voxel_coors, num_voxels, p2v


class DynamicScatter:
    """JAX/Pallas port of pcdet DynamicScatter (forward only)."""
    # TODO(synk): backward (dynamic_point_to_voxel_backward) is not implemented.

    def __init__(self, voxel_size, point_cloud_range, average_points: bool):
        self.voxel_size = voxel_size
        self.point_cloud_range = point_cloud_range
        self.average_points = average_points

    def forward(self, points, coors):
        reduce = "mean" if self.average_points else "max"
        # Both the 3-column and batched (4-column, leading batch id) cases are
        # handled by batch-major lexicographic voxel ordering, which reproduces
        # the per-batch concatenation of the reference module.
        vf, vc, m, _ = dynamic_scatter(points, coors, reduce_type=reduce)
        return vf, vc, m

    __call__ = forward


# ----------------------------------------------------------------------------
# independent numpy reference for verification
# ----------------------------------------------------------------------------
def _reference_numpy(points, coors, reduce_type):
    pts = np.asarray(points, np.float32)
    crs = np.asarray(coors, np.int64)
    valid = (crs >= 0).all(axis=1)
    vpts, vcrs = pts[valid], crs[valid]
    uniq, inv = np.unique(vcrs, axis=0, return_inverse=True)
    inv = np.asarray(inv).reshape(-1)
    m, c = uniq.shape[0], pts.shape[1]
    if reduce_type == "max":
        out = np.full((m, c), -np.inf, np.float32)
        np.maximum.at(out, inv, vpts)
        out[~np.isfinite(out)] = 0.0
    else:
        out = np.zeros((m, c), np.float64)
        np.add.at(out, inv, vpts.astype(np.float64))
        if reduce_type == "mean":
            cnt = np.bincount(inv, minlength=m).astype(np.float64)
            out = out / np.maximum(cnt, 1.0)[:, None]
        out = out.astype(np.float32)
    return out, uniq.astype(np.int32), m


if __name__ == "__main__":
    key = jax.random.PRNGKey(0)
    k1, k2, k3, k4 = jax.random.split(key, 4)

    N, C = 200, 16
    points = jax.random.normal(k1, (N, C), dtype=jnp.float32)
    # batched coors: (batch, z, y, x) in a small 4x4x4 grid, 2 batches
    batch = jnp.sort(jax.random.randint(k2, (N, 1), 0, 2), axis=0)
    zyx = jax.random.randint(k3, (N, 3), 0, 4)
    coors = jnp.concatenate([batch, zyx], axis=1).astype(jnp.int32)
    # a few invalid points (negative coordinate) that must be dropped
    drop_rows = jax.random.choice(k4, N, shape=(5,), replace=False)
    coors = coors.at[drop_rows, 1].set(-1)

    # The kernel deliberately streams features as bf16 with f32 accumulation,
    # so the reference is computed on bf16-rounded inputs.
    points_q = np.asarray(jnp.asarray(points, jnp.bfloat16).astype(jnp.float32))

    for reduce in ("max", "mean", "sum"):
        if reduce == "sum":
            vf, vc, m, _ = dynamic_scatter(points, coors, reduce_type="sum")
        else:
            scatter = DynamicScatter(voxel_size=[0.5, 0.5, 0.5],
                                     point_cloud_range=[0, 0, 0, 8, 8, 8],
                                     average_points=(reduce == "mean"))
            vf, vc, m = scatter(points, coors)
        jax.block_until_ready(vf)

        ref_out, ref_coors, m_ref = _reference_numpy(points_q, coors, reduce)
        m_i = int(m)
        assert m_i == m_ref, f"{reduce}: num_voxels {m_i} != {m_ref}"

        vf_np = np.asarray(vf)
        vc_np = np.asarray(vc)
        got = {tuple(int(x) for x in vc_np[i]): vf_np[i] for i in range(m_i)}
        want = {tuple(int(x) for x in ref_coors[i]): ref_out[i]
                for i in range(m_ref)}
        assert set(got.keys()) == set(want.keys()), f"{reduce}: coord mismatch"
        for kk, v in want.items():
            assert np.allclose(got[kk], v, atol=1e-3, rtol=1e-3), \
                f"{reduce}: feature mismatch at voxel {kk}"
        assert np.allclose(vf_np[m_i:], 0.0), f"{reduce}: padding not zero"

    print("KERNEL_OK")
</pallas_src>

<mosaic_0001>
module attributes {stable_mosaic.version = 11 : i64} {
  func.func @_scatter_max_kernel(%arg0: i32, %arg1: i32, %arg2: memref<8xi32, #tpu.memory_space<smem>>, %arg3: memref<8xi32, #tpu.memory_space<smem>>, %arg4: memref<8xi32, #tpu.memory_space<smem>>, %arg5: memref<1x256xi32, #tpu.memory_space<vmem>>, %arg6: memref<17x256xbf16, #tpu.memory_space<vmem>>, %arg7: memref<16x128xf32, #tpu.memory_space<vmem>>, %arg8: memref<17x128xf32, #tpu.memory_space<vmem>>) attributes {dimension_semantics = [#tpu.dimension_semantics<parallel>, #tpu.dimension_semantics<arbitrary>], iteration_bounds = array<i64: 2, 4>, scalar_prefetch = 3 : i64, scratch_operands = 1 : i64, tpu.core_type = #tpu.core_type<tc>, window_params = [{transform_indices = @transform_0, window_bounds = array<i64: 1, 256>}, {transform_indices = @transform_1, window_bounds = array<i64: 17, 256>}, {transform_indices = @transform_2, window_bounds = array<i64: 16, 128>}]} {
    %c4_i32 = arith.constant 4 : i32
    %0 = arith.muli %arg0, %c4_i32 : i32
    %1 = arith.addi %0, %arg1 : i32
    %2 = arith.index_cast %1 : i32 to index
    %3 = memref.load %arg4[%2] : memref<8xi32, #tpu.memory_space<smem>>
    %c1_i32 = arith.constant 1 : i32
    %4 = arith.andi %3, %c1_i32 : i32
    %c0_i32 = arith.constant 0 : i32
    %5 = arith.cmpi ne, %4, %c0_i32 : i32
    %c2_i32 = arith.constant 2 : i32
    %6 = arith.andi %3, %c2_i32 : i32
    %c0_i32_0 = arith.constant 0 : i32
    %7 = arith.cmpi ne, %6, %c0_i32_0 : i32
    %c4_i32_1 = arith.constant 4 : i32
    %8 = arith.andi %3, %c4_i32_1 : i32
    %c0_i32_2 = arith.constant 0 : i32
    %9 = arith.cmpi ne, %8, %c0_i32_2 : i32
    %10 = arith.index_cast %1 : i32 to index
    %11 = memref.load %arg2[%10] : memref<8xi32, #tpu.memory_space<smem>>
    %12 = arith.extui %9 : i1 to i32
    %c0_i32_3 = arith.constant 0 : i32
    %13 = arith.cmpi ne, %12, %c0_i32_3 : i32
    scf.if %13 {
      %c0 = arith.constant 0 : index
      %c0_5 = arith.constant 0 : index
      %16 = vector.load %arg5[%c0, %c0_5] : memref<1x256xi32, #tpu.memory_space<vmem>>, vector<1x256xi32>
      %c0_6 = arith.constant 0 : index
      %c0_7 = arith.constant 0 : index
      %17 = vector.load %arg6[%c0_6, %c0_7] : memref<17x256xbf16, #tpu.memory_space<vmem>>, vector<17x256xbf16>
      %18 = arith.extf %17 : vector<17x256xbf16> to vector<17x256xf32>
      %c255_i32 = arith.constant 255 : i32
      %19 = tpu.dynamic_rotate %16 by %c255_i32 dim 1 : vector<1x256xi32>, i32 -> vector<1x256xi32>
      %c255_i32_8 = arith.constant 255 : i32
      %20 = tpu.dynamic_rotate %18 by %c255_i32_8 dim 1 : vector<17x256xf32>, i32 -> vector<17x256xf32>
      %21 = arith.cmpi eq, %16, %19 : vector<1x256xi32>
      %22 = arith.maximumf %18, %20 : vector<17x256xf32>
      %23 = vector.shape_cast %21 : vector<1x256xi1> to vector<1x256xi1>
      %24 = vector.broadcast %23 : vector<1x256xi1> to vector<17x256xi1>
      %25 = arith.select %24, %22, %18 : vector<17x256xi1>, vector<17x256xf32>
      %c254_i32 = arith.constant 254 : i32
      %26 = tpu.dynamic_rotate %16 by %c254_i32 dim 1 : vector<1x256xi32>, i32 -> vector<1x256xi32>
      %c254_i32_9 = arith.constant 254 : i32
      %27 = tpu.dynamic_rotate %25 by %c254_i32_9 dim 1 : vector<17x256xf32>, i32 -> vector<17x256xf32>
      %28 = arith.cmpi eq, %16, %26 : vector<1x256xi32>
      %29 = arith.maximumf %25, %27 : vector<17x256xf32>
      %30 = vector.shape_cast %28 : vector<1x256xi1> to vector<1x256xi1>
      %31 = vector.broadcast %30 : vector<1x256xi1> to vector<17x256xi1>
      %32 = arith.select %31, %29, %25 : vector<17x256xi1>, vector<17x256xf32>
      %c252_i32 = arith.constant 252 : i32
      %33 = tpu.dynamic_rotate %16 by %c252_i32 dim 1 : vector<1x256xi32>, i32 -> vector<1x256xi32>
      %c252_i32_10 = arith.constant 252 : i32
      %34 = tpu.dynamic_rotate %32 by %c252_i32_10 dim 1 : vector<17x256xf32>, i32 -> vector<17x256xf32>
      %35 = arith.cmpi eq, %16, %33 : vector<1x256xi32>
      %36 = arith.maximumf %32, %34 : vector<17x256xf32>
      %37 = vector.shape_cast %35 : vector<1x256xi1> to vector<1x256xi1>
      %38 = vector.broadcast %37 : vector<1x256xi1> to vector<17x256xi1>
      %39 = arith.select %38, %36, %32 : vector<17x256xi1>, vector<17x256xf32>
      %c248_i32 = arith.constant 248 : i32
      %40 = tpu.dynamic_rotate %16 by %c248_i32 dim 1 : vector<1x256xi32>, i32 -> vector<1x256xi32>
      %c248_i32_11 = arith.constant 248 : i32
      %41 = tpu.dynamic_rotate %39 by %c248_i32_11 dim 1 : vector<17x256xf32>, i32 -> vector<17x256xf32>
      %42 = arith.cmpi eq, %16, %40 : vector<1x256xi32>
      %43 = arith.maximumf %39, %41 : vector<17x256xf32>
      %44 = vector.shape_cast %42 : vector<1x256xi1> to vector<1x256xi1>
      %45 = vector.broadcast %44 : vector<1x256xi1> to vector<17x256xi1>
      %46 = arith.select %45, %43, %39 : vector<17x256xi1>, vector<17x256xf32>
      %c240_i32 = arith.constant 240 : i32
      %47 = tpu.dynamic_rotate %16 by %c240_i32 dim 1 : vector<1x256xi32>, i32 -> vector<1x256xi32>
      %c240_i32_12 = arith.constant 240 : i32
      %48 = tpu.dynamic_rotate %46 by %c240_i32_12 dim 1 : vector<17x256xf32>, i32 -> vector<17x256xf32>
      %49 = arith.cmpi eq, %16, %47 : vector<1x256xi32>
      %50 = arith.maximumf %46, %48 : vector<17x256xf32>
      %51 = vector.shape_cast %49 : vector<1x256xi1> to vector<1x256xi1>
      %52 = vector.broadcast %51 : vector<1x256xi1> to vector<17x256xi1>
      %53 = arith.select %52, %50, %46 : vector<17x256xi1>, vector<17x256xf32>
      %c224_i32 = arith.constant 224 : i32
      %54 = tpu.dynamic_rotate %16 by %c224_i32 dim 1 : vector<1x256xi32>, i32 -> vector<1x256xi32>
      %c224_i32_13 = arith.constant 224 : i32
      %55 = tpu.dynamic_rotate %53 by %c224_i32_13 dim 1 : vector<17x256xf32>, i32 -> vector<17x256xf32>
      %56 = arith.cmpi eq, %16, %54 : vector<1x256xi32>
      %57 = arith.maximumf %53, %55 : vector<17x256xf32>
      %58 = vector.shape_cast %56 : vector<1x256xi1> to vector<1x256xi1>
      %59 = vector.broadcast %58 : vector<1x256xi1> to vector<17x256xi1>
      %60 = arith.select %59, %57, %53 : vector<17x256xi1>, vector<17x256xf32>
      %c192_i32 = arith.constant 192 : i32
      %61 = tpu.dynamic_rotate %16 by %c192_i32 dim 1 : vector<1x256xi32>, i32 -> vector<1x256xi32>
      %c192_i32_14 = arith.constant 192 : i32
      %62 = tpu.dynamic_rotate %60 by %c192_i32_14 dim 1 : vector<17x256xf32>, i32 -> vector<17x256xf32>
      %63 = arith.cmpi eq, %16, %61 : vector<1x256xi32>
      %64 = arith.maximumf %60, %62 : vector<17x256xf32>
      %65 = vector.shape_cast %63 : vector<1x256xi1> to vector<1x256xi1>
      %66 = vector.broadcast %65 : vector<1x256xi1> to vector<17x256xi1>
      %67 = arith.select %66, %64, %60 : vector<17x256xi1>, vector<17x256xf32>
      %c128_i32 = arith.constant 128 : i32
      %68 = tpu.dynamic_rotate %16 by %c128_i32 dim 1 : vector<1x256xi32>, i32 -> vector<1x256xi32>
      %c128_i32_15 = arith.constant 128 : i32
      %69 = tpu.dynamic_rotate %67 by %c128_i32_15 dim 1 : vector<17x256xf32>, i32 -> vector<17x256xf32>
      %70 = arith.cmpi eq, %16, %68 : vector<1x256xi32>
      %71 = arith.maximumf %67, %69 : vector<17x256xf32>
      %72 = vector.shape_cast %70 : vector<1x256xi1> to vector<1x256xi1>
      %73 = vector.broadcast %72 : vector<1x256xi1> to vector<17x256xi1>
      %74 = arith.select %73, %71, %67 : vector<17x256xi1>, vector<17x256xf32>
      %75 = tpu.iota {dimensions = array<i32: 1>} : vector<1x256xi32>
      %c1_i32_16 = arith.constant 1 : i32
      %76 = tpu.dynamic_rotate %16 by %c1_i32_16 dim 1 : vector<1x256xi32>, i32 -> vector<1x256xi32>
      %77 = arith.cmpi ne, %16, %76 : vector<1x256xi32>
      %cst = arith.constant 1.000000e+00 : f32
      %cst_17 = arith.constant 0.000000e+00 : f32
      %78 = vector.broadcast %cst : f32 to vector<1x256xf32>
      %79 = vector.broadcast %cst_17 : f32 to vector<1x256xf32>
      %80 = arith.select %77, %78, %79 : vector<1x256xi1>, vector<1x256xf32>
      %cst_18 = arith.constant dense<0xFF800000> : vector<1xf32>
      %81 = vector.multi_reduction <maximumf>, %80, %cst_18 [1] : vector<1x256xf32> to vector<1xf32>
      %cst_19 = arith.constant 0.000000e+00 : f32
      %82 = vector.broadcast %cst_19 : f32 to vector<1xf32>
      %83 = arith.cmpf ogt, %81, %82 : vector<1xf32>
      %84 = vector.shape_cast %83 : vector<1xi1> to vector<1x1xi1>
      %cst_20 = arith.constant dense<true> : vector<1x1xi1>
      %85 = arith.xori %84, %cst_20 : vector<1x1xi1>
      %c0_i32_21 = arith.constant 0 : i32
      %86 = vector.broadcast %c0_i32_21 : i32 to vector<1x256xi32>
      %87 = arith.cmpi eq, %75, %86 : vector<1x256xi32>
      %88 = vector.broadcast %85 : vector<1x1xi1> to vector<1x256xi1>
      %89 = arith.andi %88, %87 : vector<1x256xi1>
      %90 = arith.ori %77, %89 : vector<1x256xi1>
      %c128_i32_22 = arith.constant 128 : i32
      %91 = arith.muli %11, %c128_i32_22 : i32
      %92 = tpu.iota {dimensions = array<i32: 0>} : vector<128x1xi32>
      %93 = vector.broadcast %91 : i32 to vector<128x1xi32>
      %94 = arith.addi %93, %92 : vector<128x1xi32>
      %95 = vector.broadcast %94 : vector<128x1xi32> to vector<128x256xi32>
      %96 = vector.broadcast %16 : vector<1x256xi32> to vector<128x256xi32>
      %97 = arith.cmpi eq, %95, %96 : vector<128x256xi32>
      %98 = vector.broadcast %90 : vector<1x256xi1> to vector<128x256xi1>
      %99 = arith.andi %97, %98 : vector<128x256xi1>
      %100 = arith.extui %99 : vector<128x256xi1> to vector<128x256xi32>
      %101 = arith.sitofp %100 : vector<128x256xi32> to vector<128x256xf32>
      %102 = arith.truncf %101 : vector<128x256xf32> to vector<128x256xbf16>
      %103 = arith.truncf %74 : vector<17x256xf32> to vector<17x256xbf16>
      %cst_23 = arith.constant dense<0.000000e+00> : vector<17x128xf32>
      %104 = tpu.matmul %103, %102, %cst_23 {dimension_numbers = #tpu.dot_dimension_numbers<[1], [1], [0], [0], [0, 0, 1, 0], [], []>} : vector<17x256xbf16>, vector<128x256xbf16>, vector<17x128xf32> -> vector<17x128xf32>
      %105 = vector.extract_strided_slice %104 {offsets = [16, 0], sizes = [1, 128], strides = [1, 1]} : vector<17x128xf32> to vector<1x128xf32>
      %cst_24 = arith.constant 5.000000e-01 : f32
      %106 = vector.broadcast %cst_24 : f32 to vector<1x128xf32>
      %107 = arith.cmpf ogt, %105, %106 : vector<1x128xf32>
      %cst_25 = arith.constant 0xFF800000 : f32
      %108 = vector.shape_cast %107 : vector<1x128xi1> to vector<1x128xi1>
      %109 = vector.broadcast %108 : vector<1x128xi1> to vector<17x128xi1>
      %110 = vector.broadcast %cst_25 : f32 to vector<17x128xf32>
      %111 = arith.select %109, %104, %110 : vector<17x128xi1>, vector<17x128xf32>
      %112 = arith.extui %5 : i1 to i32
      %c0_i32_26 = arith.constant 0 : i32
      %113 = arith.cmpi ne, %112, %c0_i32_26 : i32
      scf.if %113 {
        %c0_28 = arith.constant 0 : index
        %c0_29 = arith.constant 0 : index
        %117 = vector.load %arg8[%c0_28, %c0_29] : memref<17x128xf32, #tpu.memory_space<vmem>>, vector<17x128xf32>
        tpu.vector_store %arg8[%c0_28, %c0_29], %111 {strides = array<i32>} : memref<17x128xf32, #tpu.memory_space<vmem>>, vector<17x128xf32>,
      } else {
      }
      %true = arith.constant true
      %114 = arith.xori %5, %true : i1
      %115 = arith.extui %114 : i1 to i32
      %c0_i32_27 = arith.constant 0 : i32
      %116 = arith.cmpi ne, %115, %c0_i32_27 : i32
      scf.if %116 {
        %c0_28 = arith.constant 0 : index
        %c0_29 = arith.constant 0 : index
        %117 = vector.load %arg8[%c0_28, %c0_29] : memref<17x128xf32, #tpu.memory_space<vmem>>, vector<17x128xf32>
        %118 = arith.maximumf %117, %111 : vector<17x128xf32>
        %c0_30 = arith.constant 0 : index
        %c0_31 = arith.constant 0 : index
        %119 = vector.load %arg8[%c0_30, %c0_31] : memref<17x128xf32, #tpu.memory_space<vmem>>, vector<17x128xf32>
        tpu.vector_store %arg8[%c0_30, %c0_31], %118 {strides = array<i32>} : memref<17x128xf32, #tpu.memory_space<vmem>>, vector<17x128xf32>,
      } else {
      }
    } else {
    }
    %14 = arith.extui %7 : i1 to i32
    %c0_i32_4 = arith.constant 0 : i32
    %15 = arith.cmpi ne, %14, %c0_i32_4 : i32
    scf.if %15 {
      %c0 = arith.constant 0 : index
      %c0_5 = arith.constant 0 : index
      %16 = vector.load %arg8[%c0, %c0_5] : memref<17x128xf32, #tpu.memory_space<vmem>>, vector<17x128xf32>
      %17 = vector.extract_strided_slice %16 {offsets = [0, 0], sizes = [16, 128], strides = [1, 1]} : vector<17x128xf32> to vector<16x128xf32>
      %cst = arith.constant 0xFF800000 : f32
      %18 = vector.broadcast %cst : f32 to vector<16x128xf32>
      %19 = arith.cmpf ogt, %17, %18 : vector<16x128xf32>
      %cst_6 = arith.constant 0.000000e+00 : f32
      %20 = vector.broadcast %cst_6 : f32 to vector<16x128xf32>
      %21 = arith.select %19, %17, %20 : vector<16x128xi1>, vector<16x128xf32>
      %c0_7 = arith.constant 0 : index
      %c0_8 = arith.constant 0 : index
      %22 = vector.load %arg7[%c0_7, %c0_8] : memref<16x128xf32, #tpu.memory_space<vmem>>, vector<16x128xf32>
      tpu.vector_store %arg7[%c0_7, %c0_8], %21 {strides = array<i32>} : memref<16x128xf32, #tpu.memory_space<vmem>>, vector<16x128xf32>,
    } else {
    }
    return
  }
  func.func @transform_0(%arg0: i32, %arg1: i32, %arg2: memref<8xi32, #tpu.memory_space<smem>>, %arg3: memref<8xi32, #tpu.memory_space<smem>>, %arg4: memref<8xi32, #tpu.memory_space<smem>>) -> (i32, i32) {
    %c4_i32 = arith.constant 4 : i32
    %0 = arith.muli %arg0, %c4_i32 : i32
    %1 = arith.addi %0, %arg1 : i32
    %2 = arith.index_cast %1 : i32 to index
    %3 = memref.load %arg3[%2] : memref<8xi32, #tpu.memory_space<smem>>
    %c0_i32 = arith.constant 0 : i32
    %c0_i32_0 = arith.constant 0 : i32
    return %c0_i32, %3 : i32, i32
  }
  func.func @transform_1(%arg0: i32, %arg1: i32, %arg2: memref<8xi32, #tpu.memory_space<smem>>, %arg3: memref<8xi32, #tpu.memory_space<smem>>, %arg4: memref<8xi32, #tpu.memory_space<smem>>) -> (i32, i32) {
    %c4_i32 = arith.constant 4 : i32
    %0 = arith.muli %arg0, %c4_i32 : i32
    %1 = arith.addi %0, %arg1 : i32
    %2 = arith.index_cast %1 : i32 to index
    %3 = memref.load %arg3[%2] : memref<8xi32, #tpu.memory_space<smem>>
    %c0_i32 = arith.constant 0 : i32
    %c0_i32_0 = arith.constant 0 : i32
    return %c0_i32, %3 : i32, i32
  }
  func.func @transform_2(%arg0: i32, %arg1: i32, %arg2: memref<8xi32, #tpu.memory_space<smem>>, %arg3: memref<8xi32, #tpu.memory_space<smem>>, %arg4: memref<8xi32, #tpu.memory_space<smem>>) -> (i32, i32) {
    %c4_i32 = arith.constant 4 : i32
    %0 = arith.muli %arg0, %c4_i32 : i32
    %1 = arith.addi %0, %arg1 : i32
    %2 = arith.index_cast %1 : i32 to index
    %3 = memref.load %arg2[%2] : memref<8xi32, #tpu.memory_space<smem>>
    %c0_i32 = arith.constant 0 : i32
    %c0_i32_0 = arith.constant 0 : i32
    return %c0_i32, %3 : i32, i32
  }
}

</mosaic_0001>

<llo_original>
// kernel: custom-call.2
$region0: #{custom-call.2}
  %s0 = inlined_call_operand.vmem [shape: u32[2], index: 0, kind: output, shape index: {}]

</llo_original>
